<compile_context>
chip_gen: v6e
topology: v6e:2x2x1
jax: 0.10.0
libtpu: 0.0.40
codegen_flags: <defaults>
</compile_context>

<pallas_src>
import jax
import jax.numpy as jnp
from jax import lax
from jax.experimental import pallas as pl
from jax.experimental.pallas import tpu as pltpu


def _round_up(x, m):
    return ((x + m - 1) // m) * m


def token2word_kernel(meta_ref, hs_ref, emb_ref, acc_ref):
    """One grid step: (batch block b, sequence block s). s is the reduction axis."""
    s_idx = pl.program_id(1)

    @pl.when(s_idx == 0)
    def _init():
        acc_ref[...] = jnp.zeros_like(acc_ref)

    meta = meta_ref[...]                                 # (Bb, Wp, 3) int32
    starts = meta[:, :, 0:1]                             # (Bb, Wp, 1) start index
    spans = meta[:, :, 1:2]                              # (Bb, Wp, 1) end - start
    inv = pltpu.bitcast(meta[:, :, 2:3], jnp.float32)    # (Bb, Wp, 1) masked 1/(span+1)

    hs = hs_ref[...]                                     # (Bb, Ts, Hp), input dtype
    Bb, Ts, _ = hs.shape
    Wp = meta.shape[1]

    # Sequence positions covered by this S block; pooling tile built purely in vregs.
    pos = s_idx * Ts + lax.broadcasted_iota(jnp.int32, (Bb, Wp, Ts), 2)
    rel = pos - starts
    in_range = jnp.logical_and(rel >= 0, rel <= spans)   # (Bb, Wp, Ts)
    # inv == 0 already zeroes invalid words / empty spans / W padding.
    pool = in_range.astype(jnp.float32) * inv            # (Bb, Wp, Ts) f32

    # MXU contraction in the input dtype (bf16 stays bf16); f32 accumulation.
    acc_ref[...] += jnp.einsum(
        'bws,bsh->bwh', pool.astype(hs.dtype), hs,
        preferred_element_type=jnp.float32)

    @pl.when(s_idx == pl.num_programs(1) - 1)
    def _finalize():
        emb_ref[...] = acc_ref[...].astype(emb_ref.dtype)


def _choose_tiles(B, S, Hp, Wp, hs_itemsize, out_itemsize, budget_bytes):
    """VMEM-budgeted (batch block, sequence tile) selection."""
    Ts = min(_round_up(S, 8), 512)

    def step_bytes(bb, ts):
        return bb * (2 * ts * Hp * hs_itemsize      # double-buffered hs tiles
                     + 2 * Wp * Hp * out_itemsize   # double-buffered emb tiles
                     + Wp * Hp * 4                  # f32 accumulator scratch
                     + Wp * ts * 4                  # in-register pool tile
                     + 2 * Wp * 3 * 4)              # metadata tiles

    # Shrink the sequence tile until a single-batch step fits the budget.
    while Ts > 8 and step_bytes(1, Ts) > budget_bytes:
        Ts = max(8, _round_up(Ts // 2, 8))

    Sp = _round_up(S, Ts)
    n_s = Sp // Ts

    # Grow the batch block only while it fits the budget AND the grid keeps enough
    # steps (>= ~8 when the problem allows) for pipelining / megacore sharding.
    divisors = [d for d in range(1, B + 1) if B % d == 0]
    target_steps = min(8, B * n_s)
    Bb = 1
    for d in divisors:
        if step_bytes(d, Ts) <= budget_bytes and (B // d) * n_s >= target_steps:
            Bb = d
    return Bb, Ts, Sp, n_s


def token2word(hidden_states, word_idxs, max_word_len, *,
               vmem_budget_bytes=8 * 1024 * 1024,
               vmem_limit_bytes=32 * 1024 * 1024):
    """hidden_states: (B, S, H); word_idxs: (B, W, 2) int; max_word_len: (B,) int."""
    B, S, H = hidden_states.shape
    W = word_idxs.shape[1]
    out_dtype = hidden_states.dtype

    # word_masks: trivial, kept out of the kernel (would be a lane-width-1 store).
    word_iota = jnp.arange(W, dtype=jnp.int32)[None, :]
    valid = word_iota < max_word_len.astype(jnp.int32)[:, None]           # (B, W) bool
    word_masks = valid.astype(jnp.int32)

    # Lane/sublane friendly padding: H -> x128 (lane-dense stores), W -> x8.
    Hp = _round_up(H, 128)
    Wp = _round_up(W, 8)

    hs_itemsize = jnp.dtype(hidden_states.dtype).itemsize
    out_itemsize = jnp.dtype(out_dtype).itemsize
    Bb, Ts, Sp, n_s = _choose_tiles(B, S, Hp, Wp, hs_itemsize, out_itemsize,
                                    vmem_budget_bytes)

    hs = hidden_states
    if (Sp, Hp) != (S, H):
        hs = jnp.pad(hs, ((0, 0), (0, Sp - S), (0, Hp - H)))              # zeros: inert

    # Consolidated metadata: [start, span, bitcast(inv_len)] in one int32 array.
    starts = word_idxs[..., 0].astype(jnp.int32)                          # (B, W)
    ends = word_idxs[..., 1].astype(jnp.int32)
    span = ends - starts
    inv = jnp.where(valid & (span >= 0),
                    1.0 / jnp.maximum(span + 1, 1).astype(jnp.float32), 0.0)
    meta = jnp.stack(
        [starts, span, lax.bitcast_convert_type(inv, jnp.int32)], axis=-1)  # (B, W, 3)
    if Wp != W:
        meta = jnp.pad(meta, ((0, 0), (0, Wp - W), (0, 0)))               # inv=0 rows

    grid = (B // Bb, n_s)

    emb = pl.pallas_call(
        token2word_kernel,
        out_shape=jax.ShapeDtypeStruct((B, Wp, Hp), out_dtype),
        grid=grid,
        in_specs=[
            pl.BlockSpec((Bb, Wp, 3), lambda b, s: (b, 0, 0)),
            pl.BlockSpec((Bb, Ts, Hp), lambda b, s: (b, s, 0)),
        ],
        out_specs=pl.BlockSpec((Bb, Wp, Hp), lambda b, s: (b, 0, 0)),
        scratch_shapes=[pltpu.VMEM((Bb, Wp, Hp), jnp.float32)],
        compiler_params=pltpu.CompilerParams(
            dimension_semantics=("parallel", "arbitrary"),
            vmem_limit_bytes=vmem_limit_bytes),
    )(meta, hs)

    return emb[:, :W, :H], word_masks


def _reference(hidden_states, word_idxs, max_word_len):
    # Pure-JAX mirror of the PyTorch forward (loop-free, identical semantics).
    B, S, H = hidden_states.shape
    W = word_idxs.shape[1]
    starts = word_idxs[..., 0]
    ends = word_idxs[..., 1]
    k = jnp.arange(W)[None, :]
    valid = k < max_word_len[:, None]
    length = ends - starts + 1
    inv = jnp.where(valid & (length > 0),
                    1.0 / jnp.maximum(length, 1).astype(jnp.float32), 0.0)
    j = jnp.arange(S)[None, None, :]
    in_range = (j >= starts[..., None]) & (j <= ends[..., None])
    pool = jnp.where(in_range, inv[..., None], 0.0)
    emb = jnp.einsum('bws,bsh->bwh', pool, hidden_states.astype(jnp.float32))
    return emb.astype(hidden_states.dtype), valid.astype(jnp.int32)


if __name__ == "__main__":
    # batch=2, seq_len=16, hidden=32, max_pair_sen (words per sentence)=8
    B, S, H, W = 2, 16, 32, 8

    key = jax.random.PRNGKey(0)
    kh, ks, kl, km = jax.random.split(key, 4)

    hidden_states = jax.random.normal(kh, (B, S, H), dtype=jnp.float32)
    starts = jax.random.randint(ks, (B, W), 0, S)
    span = jax.random.randint(kl, (B, W), 1, 5)
    ends = jnp.minimum(starts + span - 1, S - 1)
    word_idxs = jnp.stack([starts, ends], axis=-1).astype(jnp.int32)          # (B, W, 2)
    max_word_len = jax.random.randint(km, (B,), 1, W + 1).astype(jnp.int32)   # (B,)

    word_embedding, word_masks = token2word(hidden_states, word_idxs, max_word_len)
    jax.block_until_ready((word_embedding, word_masks))

    ref_emb, ref_masks = _reference(hidden_states, word_idxs, max_word_len)
    assert word_embedding.shape == (B, W, H)
    assert word_masks.shape == (B, W)
    assert jnp.allclose(word_embedding, ref_emb, atol=1e-5, rtol=1e-5)
    assert jnp.array_equal(word_masks, ref_masks)

    # TODO(synk): self.dropout is constructed in the PyTorch module but never applied
    # in forward(), so it is intentionally omitted here.
    print("KERNEL_OK")
</pallas_src>

<mosaic_0001>
module attributes {stable_mosaic.version = 11 : i64} {
  func.func @token2word_kernel(%arg0: i32, %arg1: i32, %arg2: memref<1x8x3xi32, #tpu.memory_space<vmem>>, %arg3: memref<1x16x128xf32, #tpu.memory_space<vmem>>, %arg4: memref<1x8x128xf32, #tpu.memory_space<vmem>>, %arg5: memref<1x8x128xf32, #tpu.memory_space<vmem>>) attributes {dimension_semantics = [#tpu.dimension_semantics<parallel>, #tpu.dimension_semantics<arbitrary>], iteration_bounds = array<i64: 2, 1>, scalar_prefetch = 0 : i64, scratch_operands = 1 : i64, tpu.core_type = #tpu.core_type<tc>, window_params = [{transform_indices = @transform_0, window_bounds = array<i64: 1, 8, 3>}, {transform_indices = @transform_1, window_bounds = array<i64: 1, 16, 128>}, {transform_indices = @transform_2, window_bounds = array<i64: 1, 8, 128>}]} {
    %c0_i32 = arith.constant 0 : i32
    %0 = arith.cmpi eq, %arg1, %c0_i32 : i32
    %1 = arith.extui %0 : i1 to i32
    %c0_i32_0 = arith.constant 0 : i32
    %2 = arith.cmpi ne, %1, %c0_i32_0 : i32
    scf.if %2 {
      %cst_15 = arith.constant 0.000000e+00 : f32
      %31 = vector.broadcast %cst_15 : f32 to vector<1x8x128xf32>
      %c0_16 = arith.constant 0 : index
      %c0_17 = arith.constant 0 : index
      %c0_18 = arith.constant 0 : index
      %32 = vector.load %arg5[%c0_16, %c0_17, %c0_18] : memref<1x8x128xf32, #tpu.memory_space<vmem>>, vector<1x8x128xf32>
      tpu.vector_store %arg5[%c0_16, %c0_17, %c0_18], %31 {strides = array<i32>} : memref<1x8x128xf32, #tpu.memory_space<vmem>>, vector<1x8x128xf32>,
    } else {
    }
    %c0 = arith.constant 0 : index
    %c0_1 = arith.constant 0 : index
    %c0_2 = arith.constant 0 : index
    %3 = vector.load %arg2[%c0, %c0_1, %c0_2] : memref<1x8x3xi32, #tpu.memory_space<vmem>>, vector<1x8x3xi32>
    %4 = vector.extract_strided_slice %3 {offsets = [0, 0, 0], sizes = [1, 8, 1], strides = [1, 1, 1]} : vector<1x8x3xi32> to vector<1x8x1xi32>
    %5 = vector.extract_strided_slice %3 {offsets = [0, 0, 1], sizes = [1, 8, 1], strides = [1, 1, 1]} : vector<1x8x3xi32> to vector<1x8x1xi32>
    %6 = vector.extract_strided_slice %3 {offsets = [0, 0, 2], sizes = [1, 8, 1], strides = [1, 1, 1]} : vector<1x8x3xi32> to vector<1x8x1xi32>
    %7 = tpu.bitcast %6 : vector<1x8x1xi32> -> vector<1x8x1xf32>
    %c0_3 = arith.constant 0 : index
    %c0_4 = arith.constant 0 : index
    %c0_5 = arith.constant 0 : index
    %8 = vector.load %arg3[%c0_3, %c0_4, %c0_5] : memref<1x16x128xf32, #tpu.memory_space<vmem>>, vector<1x16x128xf32>
    %c16_i32 = arith.constant 16 : i32
    %9 = arith.muli %arg1, %c16_i32 : i32
    %10 = tpu.iota {dimensions = array<i32: 2>} : vector<1x8x16xi32>
    %11 = vector.broadcast %9 : i32 to vector<1x8x16xi32>
    %12 = arith.addi %11, %10 : vector<1x8x16xi32>
    %13 = vector.broadcast %4 : vector<1x8x1xi32> to vector<1x8x16xi32>
    %14 = arith.subi %12, %13 : vector<1x8x16xi32>
    %c0_i32_6 = arith.constant 0 : i32
    %15 = vector.broadcast %c0_i32_6 : i32 to vector<1x8x16xi32>
    %16 = arith.cmpi sge, %14, %15 : vector<1x8x16xi32>
    %17 = vector.broadcast %5 : vector<1x8x1xi32> to vector<1x8x16xi32>
    %18 = arith.cmpi sle, %14, %17 : vector<1x8x16xi32>
    %19 = arith.andi %16, %18 : vector<1x8x16xi1>
    %20 = arith.extui %19 : vector<1x8x16xi1> to vector<1x8x16xi32>
    %21 = arith.sitofp %20 : vector<1x8x16xi32> to vector<1x8x16xf32>
    %22 = vector.broadcast %7 : vector<1x8x1xf32> to vector<1x8x16xf32>
    %23 = arith.mulf %21, %22 : vector<1x8x16xf32>
    %c0_7 = arith.constant 0 : index
    %c0_8 = arith.constant 0 : index
    %c0_9 = arith.constant 0 : index
    %24 = vector.load %arg5[%c0_7, %c0_8, %c0_9] : memref<1x8x128xf32, #tpu.memory_space<vmem>>, vector<1x8x128xf32>
    "tpu.trace_start"() <{level = 10 : i32, message = "bws,bsh->bwh"}> : () -> ()
    %cst = arith.constant dense<0.000000e+00> : vector<1x8x128xf32>
    %25 = tpu.matmul %23, %8, %cst {dimension_numbers = #tpu.dot_dimension_numbers<[2], [1], [1], [2], [0, 0, 0, 1, 1, 2], [0], [0]>} : vector<1x8x16xf32>, vector<1x16x128xf32>, vector<1x8x128xf32> -> vector<1x8x128xf32>
    "tpu.trace_stop"() : () -> ()
    %26 = arith.addf %24, %25 : vector<1x8x128xf32>
    %c0_10 = arith.constant 0 : index
    %c0_11 = arith.constant 0 : index
    %c0_12 = arith.constant 0 : index
    %27 = vector.load %arg5[%c0_10, %c0_11, %c0_12] : memref<1x8x128xf32, #tpu.memory_space<vmem>>, vector<1x8x128xf32>
    tpu.vector_store %arg5[%c0_10, %c0_11, %c0_12], %26 {strides = array<i32>} : memref<1x8x128xf32, #tpu.memory_space<vmem>>, vector<1x8x128xf32>,
    %c0_i32_13 = arith.constant 0 : i32
    %28 = arith.cmpi eq, %arg1, %c0_i32_13 : i32
    %29 = arith.extui %28 : i1 to i32
    %c0_i32_14 = arith.constant 0 : i32
    %30 = arith.cmpi ne, %29, %c0_i32_14 : i32
    scf.if %30 {
      %c0_15 = arith.constant 0 : index
      %c0_16 = arith.constant 0 : index
      %c0_17 = arith.constant 0 : index
      %31 = vector.load %arg5[%c0_15, %c0_16, %c0_17] : memref<1x8x128xf32, #tpu.memory_space<vmem>>, vector<1x8x128xf32>
      %c0_18 = arith.constant 0 : index
      %c0_19 = arith.constant 0 : index
      %c0_20 = arith.constant 0 : index
      %32 = vector.load %arg4[%c0_18, %c0_19, %c0_20] : memref<1x8x128xf32, #tpu.memory_space<vmem>>, vector<1x8x128xf32>
      tpu.vector_store %arg4[%c0_18, %c0_19, %c0_20], %31 {strides = array<i32>} : memref<1x8x128xf32, #tpu.memory_space<vmem>>, vector<1x8x128xf32>,
    } else {
    }
    return
  }
  func.func @transform_0(%arg0: i32, %arg1: i32) -> (i32, i32, i32) {
    %c0_i32 = arith.constant 0 : i32
    %c0_i32_0 = arith.constant 0 : i32
    %c0_i32_1 = arith.constant 0 : i32
    return %arg0, %c0_i32, %c0_i32_0 : i32, i32, i32
  }
  func.func @transform_1(%arg0: i32, %arg1: i32) -> (i32, i32, i32) {
    %c0_i32 = arith.constant 0 : i32
    %c0_i32_0 = arith.constant 0 : i32
    return %arg0, %arg1, %c0_i32 : i32, i32, i32
  }
  func.func @transform_2(%arg0: i32, %arg1: i32) -> (i32, i32, i32) {
    %c0_i32 = arith.constant 0 : i32
    %c0_i32_0 = arith.constant 0 : i32
    %c0_i32_1 = arith.constant 0 : i32
    return %arg0, %c0_i32, %c0_i32_0 : i32, i32, i32
  }
}

</mosaic_0001>

<llo_original>
// kernel: tpu_custom_call.1
$region0: #{tpu_custom_call.1}
  #allocation0 [shape = 'u32[]', space=smem, size = 0x4, offset = 0x4, fixed_abs, tag = 'smem constant byte address 0x4 - core index']
  #allocation1 [shape = 'u32[144,128]{1,0:T(1,128)}', space=vmem, size = 0x12000, scoped, tag = 'internal scratch']
  #allocation2 [shape = 'f32[1,8,128]{2,1,0:T(8,128)}', space=vmem, size = 0x1000, scoped, tag = 'scratch operand']
  %s0 = inlined_call_operand.vmem [shape: s32[2,8,3], index: 0, kind: input, shape index: {}]
  %s1 = inlined_call_operand.hbm [shape: f32[2,16,128], index: 1, kind: input, shape index: {}]
  %s2 = inlined_call_operand.hbm [shape: f32[2,8,128], index: 2, kind: output, shape index: {}]
  %s3 = sld [smem:[#allocation0]]
  $region53: #{tpu_custom_call.1} parent=0
    _
  %s5 = ssub.s32 1, %s3
  %s6 = scalar_select 0, %s5, %s3
  $region1: #{tpu_custom_call.1} parent=0
    #allocation3 [shape = 'u8[16384]{0}', space=vmem, size = 0x4000, scoped, tag = 'input window, operand 1']
    #allocation4 [shape = 's32[2]{0}', space=sflag, size = 0x8, scoped, tag = 'scoped memory for tpu_custom_call.1']
    #allocation5 [shape = 's32[2]{0}', space=sflag, size = 0x8, scoped, tag = 'scoped memory for tpu_custom_call.1']
    #allocation6 [shape = 'u8[8192]{0}', space=vmem, size = 0x2000, scoped, tag = 'output window, operand 0']
    %7 = vsyncpa [#allocation4], 0
    %s8 = scalar_lea.sflag [#allocation4], 1
    %9 = vsyncpa %s8, 0
    %10 = vsyncpa [#allocation5], 0
    %s11 = scalar_lea.sflag [#allocation5], 1
    %12 = vsyncpa %s11, 0
    loop: start=0, step=1, limit=4
    $region2: #{tpu_custom_call.1} parent=1 // loop_pre_header
      _
    $region3: #{tpu_custom_call.1} parent=1 // loop_header
      %s14 = sphi 0, %s18
      %p15 = scmp.ge.s32.totalorder %s14, 4
      %s21 = sphi 0, %s33
      %s22 = sphi 0, %s29
      %s23 = sphi 0, %s21
      %s24 = sphi 0, %s22
      %s25 = sphi 0, %s23
      %s26 = sphi 0, %s24
      %s36 = sphi 0, %s38
      %s39 = sphi 0, %s36
      %s40 = sphi 0, %s39
      %s56 = sphi 0, %s40
      %s64 = sphi 0, %s66
      %s67 = sphi 0, %s64
      %s68 = sphi 0, %s67
      %s84 = sphi 0, %s68
      %s90 = sphi 0, %s92
      %s93 = sphi 0, %s90
      %s94 = sphi 0, %s93
      %s110 = sphi 0, %s94
    $region4: #{tpu_custom_call.1} parent=1 // loop_header_branch
      %17 = sbr.rel (%p15) target = $region8
    $region5: #{tpu_custom_call.1} parent=1 // loop_body
      %s19 = ssub.s32 %s14, 1
      %s20 = ssub.s32 %s14, 2
      %s27 = sadd.s32 1, %s22
      %p28 = scmp.ge.s32.totalorder %s27, 1
      %s29 = scalar_select %p28, 0, %s27
      %s30 = sadd.s32 1, %s21
      %s31 = scalar_select %p28, %s30, %s21
      %p32 = scmp.ge.s32.totalorder %s31, 2
      %s33 = scalar_select %p32, 0, %s31
      %s34 = ssub.s32 %s21, %s33
      %p35 = scmp.eq.s32.totalorder %s34, 0
      %s37 = sadd.s32 %s36, 1
      %s38 = scalar_select %p35, %s36, %s37
      %p41 = pneg %p35
      %p42 = scmp.eq.s32.totalorder %s14, 1
      %p43 = por %p41, %p42
      %p44 = scmp.ne.s32.totalorder %s36, %s39
      %p45 = scmp.eq.s32.totalorder %s14, 0
      %p46 = por %p44, %p45
      %p47 = scmp.ne.s32.totalorder %s36, %s39
      %p48 = scmp.eq.s32.totalorder %s19, 1
      %p49 = por %p47, %p48
      %p50 = scmp.ne.s32.totalorder %s39, %s40
      %p51 = scmp.eq.s32.totalorder %s19, 0
      %p52 = por %p50, %p51
      %p53 = scmp.ne.s32.totalorder %s39, %s40
      %p54 = scmp.eq.s32.totalorder %s20, 1
      %p55 = por %p53, %p54
      %p57 = scmp.ne.s32.totalorder %s40, %s56
      %p58 = scmp.eq.s32.totalorder %s20, 0
      %p59 = por %p57, %p58
      %s60 = ssub.s32 %s21, %s33
      %s61 = ssub.s32 %s22, %s29
      %s62 = sor.u32 %s60, %s61
      %p63 = scmp.eq.s32.totalorder %s62, 0
      %s65 = sadd.s32 %s64, 1
      %s66 = scalar_select %p63, %s64, %s65
      %p69 = pneg %p63
      %p70 = scmp.eq.s32.totalorder %s14, 1
      %p71 = por %p69, %p70
      %p72 = scmp.ne.s32.totalorder %s64, %s67
      %p73 = scmp.eq.s32.totalorder %s14, 0
      %p74 = por %p72, %p73
      %p75 = scmp.ne.s32.totalorder %s64, %s67
      %p76 = scmp.eq.s32.totalorder %s19, 1
      %p77 = por %p75, %p76
      %p78 = scmp.ne.s32.totalorder %s67, %s68
      %p79 = scmp.eq.s32.totalorder %s19, 0
      %p80 = por %p78, %p79
      %p81 = scmp.ne.s32.totalorder %s67, %s68
      %p82 = scmp.eq.s32.totalorder %s20, 1
      %p83 = por %p81, %p82
      %p85 = scmp.ne.s32.totalorder %s68, %s84
      %p86 = scmp.eq.s32.totalorder %s20, 0
      %p87 = por %p85, %p86
      %s88 = ssub.s32 %s21, %s33
      %p89 = scmp.eq.s32.totalorder %s88, 0
      %s91 = sadd.s32 %s90, 1
      %s92 = scalar_select %p89, %s90, %s91
      %p95 = pneg %p89
      %p96 = scmp.eq.s32.totalorder %s14, 1
      %p97 = por %p95, %p96
      %p98 = scmp.ne.s32.totalorder %s90, %s93
      %p99 = scmp.eq.s32.totalorder %s14, 0
      %p100 = por %p98, %p99
      %p101 = scmp.ne.s32.totalorder %s90, %s93
      %p102 = scmp.eq.s32.totalorder %s19, 1
      %p103 = por %p101, %p102
      %p104 = scmp.ne.s32.totalorder %s93, %s94
      %p105 = scmp.eq.s32.totalorder %s19, 0
      %p106 = por %p104, %p105
      %p107 = scmp.ne.s32.totalorder %s93, %s94
      %p108 = scmp.eq.s32.totalorder %s20, 1
      %p109 = por %p107, %p108
      %p111 = scmp.ne.s32.totalorder %s94, %s110
      %p112 = scmp.eq.s32.totalorder %s20, 0
      %p113 = por %p111, %p112
      %p114 = scmp.le.s32.totalorder 1, %s14
      %p115 = scmp.lt.s32.totalorder %s14, 3
      %p116 = pnand %p114, %p115
      %p117 = pneg %p116
      // Predicated region
      $region9: #{tpu_custom_call.1} parent=5 // pred_check
        _
      $region10: #{tpu_custom_call.1} parent=5 // pred_check_branch
        %119 = sbr.rel (%p116) target = $region12
      $region11: #{tpu_custom_call.1} parent=5 // pred_region
        %s120 = ssub.s32 %s14, 1
      $region12: #{tpu_custom_call.1} parent=5 // pred_fallthru
        _
      %p121 = scmp.lt.s32.totalorder %s14, 2
      // Predicated region
      $region13: #{tpu_custom_call.1} parent=5 // pred_check
        %p122 = pneg %p121
      $region14: #{tpu_custom_call.1} parent=5 // pred_check_branch
        %124 = sbr.rel (%p122) target = $region16
      $region15: #{tpu_custom_call.1} parent=5 // pred_region
        // Predicated region
        $region17: #{tpu_custom_call.1} parent=15 // pred_check
          %p125 = pneg %p46
        $region18: #{tpu_custom_call.1} parent=15 // pred_check_branch
          %127 = sbr.rel (%p125) target = $region20
        $region19: #{tpu_custom_call.1} parent=15 // pred_region
          %p128 = scmp.lt.s32.totalorder %s21, 1
          %s129 = scalar_select %p128, %s21, 1
          %s130 = smul.addr %s129, 8
          %s131 = scalar_lea.vmem %s0, %s130
        $region20: #{tpu_custom_call.1} parent=15 // pred_fallthru
          _
        // Predicated region
        $region21: #{tpu_custom_call.1} parent=15 // pred_check
          %p132 = pneg %p74
        $region22: #{tpu_custom_call.1} parent=15 // pred_check_branch
          %134 = sbr.rel (%p132) target = $region24
        $region23: #{tpu_custom_call.1} parent=15 // pred_region
          %s135 = sand.u32 %s64, 1
          %s136 = scalar_lea.sflag [#allocation4], %s135
          %s137 = sand.u32 %s64, 1
          %s138 = smul.addr %s137, 16
          %s139 = scalar_lea.vmem [#allocation3], %s138
          %s140 = smul.u32 2, %s22
          %s142 = ssub.s32 256, 256
          %143 = vsyncadd %s136, %s142
          %s144 = smul.addr %s21, 2
          %s145 = sadd.s32 %s140, %s144
          %s146 = smul.addr %s145, 128
          %s147 = scalar_lea.hbm %s1, %s146
          %s148 = sshll.u32 %s139, 4
          %s149 = int_to_ptr.vmem [resolvable:$true] %s148
          %154 = dma.hbm_to_vmem [thread:$0]  %s147, 256, %s149, %s136, 128, 128, 8
        $region24: #{tpu_custom_call.1} parent=15 // pred_fallthru
          _
      $region16: #{tpu_custom_call.1} parent=5 // pred_fallthru
        _
      %p155 = scmp.le.s32.totalorder 1, %s14
      %p156 = scmp.lt.s32.totalorder %s14, 3
      %p157 = pnand %p155, %p156
      %p158 = pneg %p157
      // Predicated region
      $region25: #{tpu_custom_call.1} parent=5 // pred_check
        _
      $region26: #{tpu_custom_call.1} parent=5 // pred_check_branch
        %160 = sbr.rel (%p157) target = $region28
      $region27: #{tpu_custom_call.1} parent=5 // pred_region
        %s161 = ssub.s32 %s14, 1
        %s162 = sand.u32 %s67, 1
        %s163 = scalar_lea.sflag [#allocation4], %s162
        %s164 = sand.u32 %s67, 1
        %s165 = smul.addr %s164, 16
        %s166 = scalar_lea.vmem [#allocation3], %s165
        // Predicated region
        $region29: #{tpu_custom_call.1} parent=27 // pred_check
          %p167 = pneg %p80
        $region30: #{tpu_custom_call.1} parent=27 // pred_check_branch
          %169 = sbr.rel (%p167) target = $region32
        $region31: #{tpu_custom_call.1} parent=27 // pred_region
          %170 = dma.done %s163, 256
        $region32: #{tpu_custom_call.1} parent=27 // pred_fallthru
          _
        %p171 = scmp.lt.s32.totalorder %s23, 1
        %s172 = scalar_select %p171, %s23, 1
        %s173 = smul.addr %s172, 8
        %s174 = scalar_lea.vmem %s0, %s173
        %p175 = pneg %p52
        %p176 = pneg %p49
        %s177 = sand.u32 %s67, 1
        %s178 = scalar_lea.sflag [#allocation4], %s177
        %s179 = sand.u32 %s67, 1
        %s180 = smul.addr %s179, 16
        %s181 = scalar_lea.vmem [#allocation3], %s180
        %p182 = pneg %p80
        %p183 = pneg %p77
        %p184 = pneg %p106
        %p185 = pneg %p103
        %s186 = sand.u32 %s93, 1
        %s187 = scalar_lea.sflag [#allocation5], %s186
        %s188 = sand.u32 %s93, 1
        %s189 = smul.addr %s188, 8
        %s190 = scalar_lea.vmem [#allocation6], %s189
        %p191 = scmp.lt.s32.totalorder %s23, 1
        %s192 = scalar_select %p191, %s23, 1
        %s193 = smul.addr %s192, 8
        %s194 = scalar_lea.vmem %s0, %s193
        %s195 = smul.u32 2, %s24
        %p196 = scmp.eq.s32.totalorder %s24, 0
        // Predicated region
        $region33: #{tpu_custom_call.1} parent=27 // pred_check
          %p197 = pneg %p196
        $region34: #{tpu_custom_call.1} parent=27 // pred_check_branch
          %199 = sbr.rel (%p197) target = $region36
        $region35: #{tpu_custom_call.1} parent=27 // pred_region
          %200 = vst [vmem:[#allocation2] sm:$0xff] 0.0
        $region36: #{tpu_custom_call.1} parent=27 // pred_fallthru
          _
        %v201 = vld [vmem:[%s194] sm:$0xff]
        %v202 = vld [vmem:[%s166] sm:$0xff]
        %v203 = vld [vmem:[%s166 + $0x8] sm:$0xff]
        %s204 = smul.u32 %s24, 16
        %v205 = vlaneseq
        %v206 = vand.u32 %v205, 127
        %v207 = vstv %s204
        %v208 = vadd.s32 %v207, %v206
        %209 = vset.pattern.permute.xlu0 0
        %210 = vperm.xlu0 %209, %v201
        %v211 = vpop.permute.xlu0 %210
        %v212 = vsub.s32 %v208, %v211
        %vm213 = vcmp.ge.s32.totalorder %v212, 0
        %214 = vset.pattern.permute.xlu0 1
        %215 = vperm.xlu0 %214, %v201
        %v216 = vpop.permute.xlu0 %215
        %vm217 = vcmp.le.s32.totalorder %v212, %v216
        %vm218 = vmand %vm213, %vm217
        %v219 = vsel %vm218, 1, 0
        %v220 = vcvt.s32.f32 %v219
        %221 = vset.pattern.permute.xlu0 2
        %222 = vperm.xlu0 %221, %v201
        %v223 = vpop.permute.xlu0 %222
        %v225 = vmul.f32 %v220, %v223
        %v226 = vld [vmem:[#allocation2] sm:$0xff]
        %vm227 = vcmask 130048
        %v229 = vsel %vm227, %v225, 0
        %231 = vmatprep.subr.mxu0 0.0
        %232 = vmatpush1.msra.mxu0 0.0
        %233 = vmatprep.subr.mxu0 0.0
        %234 = vmatpush1.msra.mxu0 0.0
        %235 = vmatprep.subr.mxu0 0.0
        %236 = vmatpush1.msra.mxu0 0.0
        %237 = vmatprep.subr.mxu0 0.0
        %238 = vmatpush1.msra.mxu0 0.0
        %239 = vmatprep.subr.mxu0 0.0
        %240 = vmatpush1.msra.mxu0 0.0
        %241 = vmatprep.subr.mxu0 0.0
        %242 = vmatpush1.msra.mxu0 0.0
        %243 = vmatprep.subr.mxu0 0.0
        %244 = vmatpush1.msra.mxu0 0.0
        %245 = vmatprep.subr.mxu0 0.0
        %246 = vmatpush1.msra.mxu0 0.0
        %247 = vmatprep.subr.mxu0 0.0
        %248 = vmatpush1.msra.mxu0 0.0
        %249 = vmatprep.subr.mxu0 0.0
        %250 = vmatpush1.msra.mxu0 0.0
        %251 = vmatprep.subr.mxu0 0.0
        %252 = vmatpush1.msra.mxu0 0.0
        %253 = vmatprep.subr.mxu0 0.0
        %254 = vmatpush1.msra.mxu0 0.0
        %255 = vmatprep.subr.mxu0 0.0
        %256 = vmatpush1.msra.mxu0 0.0
        %257 = vmatprep.subr.mxu0 0.0
        %258 = vmatpush1.msra.mxu0 0.0
        %259 = vmatprep.subr.mxu0 0.0
        %260 = vmatpush1.msra.mxu0 %v203
        %261 = vmatprep.subr.mxu0 0.0
        %262 = vmatpush1.msra.mxu0 %v202
        %263 = vmatprep.subr.mxu0 0.0
        %264 = vmatpush2.msra.mxu0 0.0
        %265 = vmatprep.subr.mxu0 0.0
        %266 = vmatpush2.msra.mxu0 0.0
        %267 = vmatprep.subr.mxu0 0.0
        %268 = vmatpush2.msra.mxu0 0.0
        %269 = vmatprep.subr.mxu0 0.0
        %270 = vmatpush2.msra.mxu0 0.0
        %271 = vmatprep.subr.mxu0 0.0
        %272 = vmatpush2.msra.mxu0 0.0
        %273 = vmatprep.subr.mxu0 0.0
        %274 = vmatpush2.msra.mxu0 0.0
        %275 = vmatprep.subr.mxu0 0.0
        %276 = vmatpush2.msra.mxu0 0.0
        %277 = vmatprep.subr.mxu0 0.0
        %278 = vmatpush2.msra.mxu0 0.0
        %279 = vmatprep.subr.mxu0 0.0
        %280 = vmatpush2.msra.mxu0 0.0
        %281 = vmatprep.subr.mxu0 0.0
        %282 = vmatpush2.msra.mxu0 0.0
        %283 = vmatprep.subr.mxu0 0.0
        %284 = vmatpush2.msra.mxu0 0.0
        %285 = vmatprep.subr.mxu0 0.0
        %286 = vmatpush2.msra.mxu0 0.0
        %287 = vmatprep.subr.mxu0 0.0
        %288 = vmatpush2.msra.mxu0 0.0
        %289 = vmatprep.subr.mxu0 0.0
        %290 = vmatpush2.msra.mxu0 0.0
        %291 = vmatprep.subr.mxu0 0.0
        %292 = vmatpush2.msra.mxu0 0.0
        %293 = vmatprep.subr.mxu0 0.0
        %294 = vmatpush2.msra.mxu0 0.0
        %295 = vmatprep.mubr.f32.mxu0 0.0
        %296 = vmatmul.mubr.f32.gmra.mxu0 %v229
        %v297 = vpop.f32.mrf.mxu0
        %v298 = vadd.f32 0.0, %v297
        %v299 = vpop.f32.mrf.mxu0
        %300 = vdwg.mxu0
        %v301 = vadd.f32 %v226, %v298
        %302 = vst [vmem:[#allocation2] sm:$0xff] %v301
        // Predicated region
        $region37: #{tpu_custom_call.1} parent=27 // pred_check
          %p303 = pneg %p196
        $region38: #{tpu_custom_call.1} parent=27 // pred_check_branch
          %305 = sbr.rel (%p303) target = $region40
        $region39: #{tpu_custom_call.1} parent=27 // pred_region
          %v306 = vld [vmem:[#allocation2] sm:$0xff]
          %307 = vst [vmem:[%s190] sm:$0xff] %v306
        $region40: #{tpu_custom_call.1} parent=27 // pred_fallthru
          _
        %s308 = sand.u32 %s93, 1
        %s309 = scalar_lea.sflag [#allocation5], %s308
        %s310 = sand.u32 %s93, 1
        %s311 = smul.addr %s310, 8
        %s312 = scalar_lea.vmem [#allocation6], %s311
        // Predicated region
        $region41: #{tpu_custom_call.1} parent=27 // pred_check
          %p313 = pneg %p103
        $region42: #{tpu_custom_call.1} parent=27 // pred_check_branch
          %315 = sbr.rel (%p313) target = $region44
        $region43: #{tpu_custom_call.1} parent=27 // pred_region
          %s317 = ssub.s32 128, 128
          %318 = vsyncadd %s309, %s317
          %s319 = smul.addr %s23, 128
          %s320 = scalar_lea.hbm %s2, %s319
          %s322 = sshll.u32 %s312, 4
          %s323 = int_to_ptr.vmem [resolvable:$true] %s322
          %325 = dma.vmem_to_hbm [thread:$0]  %s323, 128, %s320, %s309
        $region44: #{tpu_custom_call.1} parent=27 // pred_fallthru
          _
      $region28: #{tpu_custom_call.1} parent=5 // pred_fallthru
        _
      %p326 = scmp.le.s32.totalorder 2, %s14
      // Predicated region
      $region45: #{tpu_custom_call.1} parent=5 // pred_check
        %p327 = pneg %p326
      $region46: #{tpu_custom_call.1} parent=5 // pred_check_branch
        %329 = sbr.rel (%p327) target = $region48
      $region47: #{tpu_custom_call.1} parent=5 // pred_region
        %s330 = ssub.s32 %s14, 2
        // Predicated region
        $region49: #{tpu_custom_call.1} parent=47 // pred_check
          %p331 = pneg %p109
        $region50: #{tpu_custom_call.1} parent=47 // pred_check_branch
          %333 = sbr.rel (%p331) target = $region52
        $region51: #{tpu_custom_call.1} parent=47 // pred_region
          %s334 = sand.u32 %s94, 1
          %s335 = scalar_lea.sflag [#allocation5], %s334
          %s336 = sand.u32 %s94, 1
          %s337 = smul.addr %s336, 8
          %s338 = scalar_lea.vmem [#allocation6], %s337
          %339 = dma.done %s335, 128
        $region52: #{tpu_custom_call.1} parent=47 // pred_fallthru
          _
      $region48: #{tpu_custom_call.1} parent=5 // pred_fallthru
        _
    $region6: #{tpu_custom_call.1} parent=1 // loop_footer
      %s18 = sadd.s32 1, %s14
    $region7: #{tpu_custom_call.1} parent=1 // loop_footer_branch
      %13 = sbr.rel target = $region3
    $region8: #{tpu_custom_call.1} parent=1 // loop_exit
      _
    %340 = vsyncpa [#allocation4], 1
    %s341 = scalar_lea.sflag [#allocation4], 1
    %342 = vsyncpa %s341, 1
    %343 = vsyncpa [#allocation5], 1
    %s344 = scalar_lea.sflag [#allocation5], 1
    %345 = vsyncpa %s344, 1

</llo_original>
